<compile_context>
chip_gen: v7x
topology: tpu7x:2x2x1
jax: 0.10.0
libtpu: 0.0.40
codegen_flags: <defaults>
</compile_context>

<pallas_src>
import functools

import jax
import jax.numpy as jnp
from jax import lax
from jax.experimental import pallas as pl
from jax.experimental.pallas import tpu as pltpu


def _round_up(x, m):
    return (x + m - 1) // m * m


def _cdiv(a, b):
    return (a + b - 1) // b


# ------------- Pass 1: GEMM -> per-tile BN partial stats (stats only) --------

def _gemm_stats_kernel(w_ref, p_ref, sum_ref, sq_ref):
    # [OC_pad, K_pad] @ [K_pad, TILE_S] on the MXU, f32 accumulation.
    acc = jnp.dot(w_ref[...], p_ref[0], preferred_element_type=jnp.float32)
    # Channels live on sublanes -> per-channel stats are lane (XLU) reductions,
    # stored directly (no concatenated intermediate).
    sum_ref[0, 0] = jnp.sum(acc, axis=1, keepdims=True)          # [OC_pad, 1]
    sq_ref[0, 0] = jnp.sum(acc * acc, axis=1, keepdims=True)     # [OC_pad, 1]


# -------- Pass 2: recompute GEMM, fold BN scale/shift, LeakyReLU, store ------

def _gemm_bn_lrelu_kernel(w_ref, p_ref, scale_ref, shift_ref, o_ref, *,
                          negative_slope):
    acc = jnp.dot(w_ref[...], p_ref[0], preferred_element_type=jnp.float32)
    y = acc * scale_ref[...] + shift_ref[...]                    # [OC_pad, TILE_S]
    o_ref[0] = jnp.where(y > 0, y, negative_slope * y).astype(o_ref.dtype)


def _im2col_t(x, kh, kw, stride, padding, oh, ow, k_pad, s_pad, compute_dtype):
    """x: [N, C, H, W] -> patches [N, K_pad, S_pad], K = C*KH*KW channel-major,
    S = OH*OW.  Built in compute dtype and padded exactly once."""
    # TODO(synk): gather patches in-kernel (pl.ANY HBM refs + make_async_copy,
    # or a direct-conv kh*kw reduction axis) so the KH*KW / K-pad inflation of
    # materialized im2col never hits HBM (biggest win on v5e).
    n, c, _, _ = x.shape
    xc = x.astype(compute_dtype)
    xp = jnp.pad(xc, ((0, 0), (0, 0), (padding, padding), (padding, padding)))
    slabs = []
    for i in range(kh):
        for j in range(kw):
            slabs.append(
                xp[:, :, i:i + stride * oh:stride, j:j + stride * ow:stride])
    stacked = jnp.stack(slabs, axis=0)                   # [KH*KW, N, C, OH, OW]
    patches = jnp.transpose(stacked, (1, 2, 0, 3, 4)).reshape(
        n, c * kh * kw, oh * ow)                         # [N, K, S]
    k = c * kh * kw
    s = oh * ow
    return jnp.pad(patches, ((0, 0), (0, k_pad - k), (0, s_pad - s)))


def conv_forward(x, weight, gamma, beta, *, stride=1, padding=0, eps=1e-5,
                 negative_slope=0.01, tile_s=1024,
                 compute_dtype=jnp.bfloat16,
                 vmem_budget_bytes=28 * 1024 * 1024):
    """Forward of the PyTorch `Conv` block.

    x:          [N, C, H, W]   (NCHW, like PyTorch)
    weight:     [OC, C, KH, KW]
    gamma/beta: [OC]
    returns     [N, OC, OH, OW]
    """
    n, c, h, w = x.shape
    oc, _, kh, kw = weight.shape
    oh = (h + 2 * padding - kh) // stride + 1
    ow = (w + 2 * padding - kw) // stride + 1
    s_total = oh * ow
    k = c * kh * kw
    m_true = n * s_total

    # OC sits on sublanes in this orientation -> 16 (bf16 sublane pack) is
    # enough padding; K stays lane-aligned at 128 for the MXU contraction.
    oc_pad = _round_up(oc, 16)
    k_pad = _round_up(k, 128)

    # ---- spatial tile: lane-dense, >= 2 grid blocks (v7x megacore), and a
    # double-buffered working set within the VMEM budget. ----
    comp_bytes = jnp.dtype(compute_dtype).itemsize
    out_bytes = jnp.dtype(x.dtype).itemsize
    tile_s = min(tile_s, _round_up(s_total, 128))
    if n == 1 and s_total > 128:
        tile_s = min(tile_s, _round_up(_cdiv(s_total, 2), 128))

    def _footprint(t):
        return (2 * (k_pad * t * comp_bytes            # patches (double buf)
                     + oc_pad * k_pad * comp_bytes     # resident weight bufs
                     + oc_pad * t * out_bytes)         # output (double buf)
                + 4 * oc_pad * 4)                      # scale/shift

    while tile_s > 128 and _footprint(tile_s) > vmem_budget_bytes:
        tile_s = _round_up(tile_s // 2, 128)
    s_pad = _round_up(s_total, tile_s)
    s_tiles = s_pad // tile_s
    grid = (n, s_tiles)

    patches = _im2col_t(x, kh, kw, stride, padding, oh, ow, k_pad, s_pad,
                        compute_dtype)                                 # [N,K_pad,S_pad]
    w_t = jnp.pad(weight.reshape(oc, k).astype(compute_dtype),
                  ((0, oc_pad - oc), (0, k_pad - k)))                  # [OC_pad,K_pad]

    vmem_limit = 48 * 1024 * 1024
    flops_gemm = 2 * n * s_pad * k_pad * oc_pad
    patches_bytes = patches.size * comp_bytes
    weight_bytes = w_t.size * comp_bytes

    # TODO(synk): for very deep layers (K_pad*OC_pad weight no longer VMEM
    # resident, or K_pad >= 2*OC_pad) add a K grid axis ("arbitrary") with an
    # f32 accumulator and/or switch back to a bf16-intermediate two-pass path.
    # TODO(synk): mark the constant-index weight/scale/shift blocks
    # pipeline_mode=pl.Buffered(1) once single-buffering support is confirmed.

    # ---------------- Pass 1: exact global BN batch stats ----------------
    sums, sqs = pl.pallas_call(
        _gemm_stats_kernel,
        out_shape=(jax.ShapeDtypeStruct((n, s_tiles, oc_pad, 1), jnp.float32),
                   jax.ShapeDtypeStruct((n, s_tiles, oc_pad, 1), jnp.float32)),
        grid_spec=pltpu.PrefetchScalarGridSpec(
            num_scalar_prefetch=0,
            grid=grid,
            in_specs=[
                pl.BlockSpec((oc_pad, k_pad), lambda ni, si: (0, 0)),    # resident
                pl.BlockSpec((1, k_pad, tile_s), lambda ni, si: (ni, 0, si)),
            ],
            out_specs=(
                pl.BlockSpec((1, 1, oc_pad, 1), lambda ni, si: (ni, si, 0, 0)),
                pl.BlockSpec((1, 1, oc_pad, 1), lambda ni, si: (ni, si, 0, 0)),
            ),
        ),
        compiler_params=pltpu.CompilerParams(
            dimension_semantics=("parallel", "parallel"),
            vmem_limit_bytes=vmem_limit),
        cost_estimate=pl.CostEstimate(
            flops=flops_gemm + 3 * n * s_pad * oc_pad,
            transcendentals=0,
            bytes_accessed=patches_bytes + weight_bytes
                           + 2 * n * s_tiles * oc_pad * 4),
    )(w_t, patches)

    # Tiny reduction + BN fold (f32, in plain JAX).  Padded spatial columns and
    # padded channels are exactly zero so they contribute nothing.
    sum_c = jnp.sum(sums, axis=(0, 1))[:, 0]              # [OC_pad]
    sq_c = jnp.sum(sqs, axis=(0, 1))[:, 0]
    mean = sum_c / m_true
    var = jnp.maximum(sq_c / m_true - mean * mean, 0.0)   # biased, as PyTorch
    # TODO(synk): combine per-tile (mean, M2) Welford-style if E[x^2]-E[x]^2
    # cancellation ever matters for very large batches.
    inv = lax.rsqrt(var + eps)
    gamma_p = jnp.pad(gamma.astype(jnp.float32), (0, oc_pad - oc))
    beta_p = jnp.pad(beta.astype(jnp.float32), (0, oc_pad - oc))
    scale = (gamma_p * inv)[:, None]                      # [OC_pad, 1]
    shift = (beta_p - mean * gamma_p * inv)[:, None]      # [OC_pad, 1]

    # -------- Pass 2: recompute GEMM + BN scale/shift + LeakyReLU --------
    out_full = pl.pallas_call(
        functools.partial(_gemm_bn_lrelu_kernel, negative_slope=negative_slope),
        out_shape=jax.ShapeDtypeStruct((n, oc_pad, s_pad), x.dtype),
        grid_spec=pltpu.PrefetchScalarGridSpec(
            num_scalar_prefetch=0,
            grid=grid,
            in_specs=[
                pl.BlockSpec((oc_pad, k_pad), lambda ni, si: (0, 0)),    # resident
                pl.BlockSpec((1, k_pad, tile_s), lambda ni, si: (ni, 0, si)),
                pl.BlockSpec((oc_pad, 1), lambda ni, si: (0, 0)),        # resident
                pl.BlockSpec((oc_pad, 1), lambda ni, si: (0, 0)),        # resident
            ],
            out_specs=pl.BlockSpec((1, oc_pad, tile_s),
                                   lambda ni, si: (ni, 0, si)),
        ),
        compiler_params=pltpu.CompilerParams(
            dimension_semantics=("parallel", "parallel"),
            vmem_limit_bytes=vmem_limit),
        cost_estimate=pl.CostEstimate(
            flops=flops_gemm + 4 * n * s_pad * oc_pad,
            transcendentals=0,
            bytes_accessed=patches_bytes + weight_bytes
                           + n * oc_pad * s_pad * out_bytes),
    )(w_t, patches, scale, shift)

    # Output is already channel-major: final NCHW is just slice + reshape.
    return out_full[:, :oc, :s_total].reshape(n, oc, oh, ow)


def _reference(x, weight, gamma, beta, *, stride, padding,
               eps=1e-5, negative_slope=0.01):
    y = lax.conv_general_dilated(
        x, weight, window_strides=(stride, stride),
        padding=[(padding, padding), (padding, padding)],
        dimension_numbers=("NCHW", "OIHW", "NCHW"))
    mean = jnp.mean(y, axis=(0, 2, 3), keepdims=True)
    var = jnp.mean((y - mean) ** 2, axis=(0, 2, 3), keepdims=True)
    yhat = (y - mean) * lax.rsqrt(var + eps)
    yhat = yhat * gamma.reshape(1, -1, 1, 1) + beta.reshape(1, -1, 1, 1)
    return jnp.where(yhat > 0, yhat, negative_slope * yhat)


if __name__ == "__main__":
    key = jax.random.PRNGKey(0)
    k_x, k_w = jax.random.split(key)

    # Small shapes consistent with the module: Conv(in=4, out=8, k=3, s=1, p=1)
    N, C, H, W = 2, 4, 16, 16
    OC, KH, KW = 8, 3, 3
    stride, padding = 1, 1

    x = jax.random.normal(k_x, (N, C, H, W), dtype=jnp.float32)
    weight = jax.random.normal(k_w, (OC, C, KH, KW), dtype=jnp.float32) * 0.1
    gamma = jnp.ones((OC,), dtype=jnp.float32)   # BatchNorm2d default init
    beta = jnp.zeros((OC,), dtype=jnp.float32)

    ref = _reference(x, weight, gamma, beta, stride=stride, padding=padding)

    # f32 MXU path (exact check); tile_s=128 -> grid (2, 2), exercising the
    # cross-tile partial-stats reduction and the pipelined spatial axis.
    out_f32 = conv_forward(x, weight, gamma, beta, stride=stride,
                           padding=padding, tile_s=128,
                           compute_dtype=jnp.float32)
    out_f32 = jax.block_until_ready(out_f32)
    assert out_f32.shape == (N, OC, H, W)
    assert jnp.allclose(out_f32, ref, atol=1e-4, rtol=1e-4)

    # bf16 MXU path (default), f32 accumulation + f32 BN stats/apply.
    out_bf16 = conv_forward(x, weight, gamma, beta, stride=stride,
                            padding=padding, compute_dtype=jnp.bfloat16)
    out_bf16 = jax.block_until_ready(out_bf16)
    assert out_bf16.shape == (N, OC, H, W)
    assert jnp.allclose(out_bf16, ref, atol=5e-2, rtol=5e-2)

    print("KERNEL_OK")
</pallas_src>

<mosaic_0001>
module attributes {stable_mosaic.version = 11 : i64} {
  func.func @_gemm_stats_kernel(%arg0: i32, %arg1: i32, %arg2: memref<16x128xf32, #tpu.memory_space<vmem>>, %arg3: memref<1x128x128xf32, #tpu.memory_space<vmem>>, %arg4: memref<1x1x16x1xf32, #tpu.memory_space<vmem>>, %arg5: memref<1x1x16x1xf32, #tpu.memory_space<vmem>>) attributes {dimension_semantics = [#tpu.dimension_semantics<parallel>, #tpu.dimension_semantics<parallel>], iteration_bounds = array<i64: 2, 2>, scalar_prefetch = 0 : i64, scratch_operands = 0 : i64, tpu.core_type = #tpu.core_type<tc>, window_params = [{pipeline_mode = #tpu.pipeline_mode<synchronous>, transform_indices = @transform_0, window_bounds = array<i64: 16, 128>}, {transform_indices = @transform_1, window_bounds = array<i64: 1, 128, 128>}, {transform_indices = @transform_2, window_bounds = array<i64: 1, 1, 16, 1>}, {transform_indices = @transform_3, window_bounds = array<i64: 1, 1, 16, 1>}]} {
    %c0 = arith.constant 0 : index
    %c0_0 = arith.constant 0 : index
    %0 = vector.load %arg2[%c0, %c0_0] : memref<16x128xf32, #tpu.memory_space<vmem>>, vector<16x128xf32>
    %c0_1 = arith.constant 0 : index
    %c0_2 = arith.constant 0 : index
    %c0_3 = arith.constant 0 : index
    %1 = vector.load %arg3[%c0_1, %c0_2, %c0_3] : memref<1x128x128xf32, #tpu.memory_space<vmem>>, vector<1x128x128xf32>
    %2 = vector.shape_cast %1 : vector<1x128x128xf32> to vector<128x128xf32>
    %cst = arith.constant dense<0.000000e+00> : vector<16x128xf32>
    %3 = tpu.matmul %0, %2, %cst {dimension_numbers = #tpu.dot_dimension_numbers<[1], [0], [0], [1], [0, 0, 1, 1], [], []>} : vector<16x128xf32>, vector<128x128xf32>, vector<16x128xf32> -> vector<16x128xf32>
    %cst_4 = arith.constant dense<0.000000e+00> : vector<16xf32>
    %4 = vector.multi_reduction <add>, %3, %cst_4 [1] : vector<16x128xf32> to vector<16xf32>
    %5 = vector.shape_cast %4 : vector<16xf32> to vector<16x1xf32>
    %c0_5 = arith.constant 0 : index
    %c0_6 = arith.constant 0 : index
    %c0_7 = arith.constant 0 : index
    %c0_8 = arith.constant 0 : index
    %6 = vector.load %arg4[%c0_5, %c0_6, %c0_7, %c0_8] : memref<1x1x16x1xf32, #tpu.memory_space<vmem>>, vector<1x1x16x1xf32>
    %7 = vector.shape_cast %6 : vector<1x1x16x1xf32> to vector<16x1xf32>
    %8 = vector.shape_cast %5 : vector<16x1xf32> to vector<1x1x16x1xf32>
    tpu.vector_store %arg4[%c0_5, %c0_6, %c0_7, %c0_8], %8 {strides = array<i32>} : memref<1x1x16x1xf32, #tpu.memory_space<vmem>>, vector<1x1x16x1xf32>,
    %9 = arith.mulf %3, %3 : vector<16x128xf32>
    %cst_9 = arith.constant dense<0.000000e+00> : vector<16xf32>
    %10 = vector.multi_reduction <add>, %9, %cst_9 [1] : vector<16x128xf32> to vector<16xf32>
    %11 = vector.shape_cast %10 : vector<16xf32> to vector<16x1xf32>
    %c0_10 = arith.constant 0 : index
    %c0_11 = arith.constant 0 : index
    %c0_12 = arith.constant 0 : index
    %c0_13 = arith.constant 0 : index
    %12 = vector.load %arg5[%c0_10, %c0_11, %c0_12, %c0_13] : memref<1x1x16x1xf32, #tpu.memory_space<vmem>>, vector<1x1x16x1xf32>
    %13 = vector.shape_cast %12 : vector<1x1x16x1xf32> to vector<16x1xf32>
    %14 = vector.shape_cast %11 : vector<16x1xf32> to vector<1x1x16x1xf32>
    tpu.vector_store %arg5[%c0_10, %c0_11, %c0_12, %c0_13], %14 {strides = array<i32>} : memref<1x1x16x1xf32, #tpu.memory_space<vmem>>, vector<1x1x16x1xf32>,
    return
  }
  func.func @transform_0(%arg0: i32, %arg1: i32) -> (i32, i32) {
    %c0_i32 = arith.constant 0 : i32
    %c0_i32_0 = arith.constant 0 : i32
    %c0_i32_1 = arith.constant 0 : i32
    return %c0_i32, %c0_i32_0 : i32, i32
  }
  func.func @transform_1(%arg0: i32, %arg1: i32) -> (i32, i32, i32) {
    %c0_i32 = arith.constant 0 : i32
    %c0_i32_0 = arith.constant 0 : i32
    return %arg0, %c0_i32, %arg1 : i32, i32, i32
  }
  func.func @transform_2(%arg0: i32, %arg1: i32) -> (i32, i32, i32, i32) {
    %c0_i32 = arith.constant 0 : i32
    %c0_i32_0 = arith.constant 0 : i32
    %c0_i32_1 = arith.constant 0 : i32
    return %arg0, %arg1, %c0_i32, %c0_i32_0 : i32, i32, i32, i32
  }
  func.func @transform_3(%arg0: i32, %arg1: i32) -> (i32, i32, i32, i32) {
    %c0_i32 = arith.constant 0 : i32
    %c0_i32_0 = arith.constant 0 : i32
    %c0_i32_1 = arith.constant 0 : i32
    return %arg0, %arg1, %c0_i32, %c0_i32_0 : i32, i32, i32, i32
  }
}

</mosaic_0001>

<llo_original>
// kernel: tpu_custom_call.1
$region0: #{tpu_custom_call.1}
  #allocation0 [shape = 'u32[]', space=smem, size = 0x4, offset = 0x4, fixed_abs, tag = 'smem constant byte address 0x4 - core index']
  #allocation1 [shape = 'u32[144,128]{1,0:T(1,128)}', space=vmem, size = 0x12000, scoped, tag = 'internal scratch']
  %s0 = inlined_call_operand.hbm [shape: f32[16,128], index: 0, kind: input, shape index: {}]
  %s1 = inlined_call_operand.hbm [shape: f32[2,128,256], index: 1, kind: input, shape index: {}]
  %s2 = inlined_call_operand.vmem [shape: f32[2,2,16,1], index: 2, kind: output, shape index: {0}]
  %s3 = inlined_call_operand.vmem [shape: f32[2,2,16,1], index: 3, kind: output, shape index: {1}]
  %4 = xla_tuple %s2, %s3
  %s5 = sld [smem:[#allocation0]]
  $region57: #{tpu_custom_call.1} parent=0
    _
  %s7 = ssub.s32 1, %s5
  %s8 = scalar_select 0, %s7, %s5
  $region1: #{tpu_custom_call.1} parent=0
    #allocation2 [shape = 'u8[8192]{0}', space=vmem, size = 0x2000, scoped, tag = 'input window, operand 0, single buffered']
    #allocation3 [shape = 's32[2]{0}', space=sflag, size = 0x8, scoped, tag = 'scoped memory for tpu_custom_call.1']
    #allocation4 [shape = 'u8[131072]{0}', space=vmem, size = 0x20000, scoped, tag = 'input window, operand 1']
    #allocation5 [shape = 's32[2]{0}', space=sflag, size = 0x8, scoped, tag = 'scoped memory for tpu_custom_call.1']
    %9 = vsyncpa [#allocation3], 0
    %10 = vsyncpa [#allocation5], 0
    %s11 = scalar_lea.sflag [#allocation5], 1
    %12 = vsyncpa %s11, 0
    loop: start=0, step=1, limit=6
    $region2: #{tpu_custom_call.1} parent=1 // loop_pre_header
      _
    $region3: #{tpu_custom_call.1} parent=1 // loop_header
      %s14 = sphi 0, %s18
      %p15 = scmp.ge.s32.totalorder %s14, 6
      %s21 = sphi 0, %s33
      %s22 = sphi 0, %s29
      %s23 = sphi 0, %s21
      %s24 = sphi 0, %s22
      %s25 = sphi 0, %s23
      %s26 = sphi 0, %s24
      %s34 = sphi 0, %s34
      %s36 = sphi 0, %s34
      %s37 = sphi 0, %s36
      %s51 = sphi 0, %s37
      %s59 = sphi 0, %s61
      %s62 = sphi 0, %s59
      %s63 = sphi 0, %s62
      %s79 = sphi 0, %s63
      %s87 = sphi 0, %s89
      %s90 = sphi 0, %s87
      %s91 = sphi 0, %s90
      %s107 = sphi 0, %s91
      %s115 = sphi 0, %s117
      %s118 = sphi 0, %s115
      %s119 = sphi 0, %s118
      %s135 = sphi 0, %s119
    $region4: #{tpu_custom_call.1} parent=1 // loop_header_branch
      %17 = sbr.rel (%p15) target = $region8
    $region5: #{tpu_custom_call.1} parent=1 // loop_body
      %s19 = ssub.s32 %s14, 1
      %s20 = ssub.s32 %s14, 2
      %s27 = sadd.s32 1, %s22
      %p28 = scmp.ge.s32.totalorder %s27, 2
      %s29 = scalar_select %p28, 0, %s27
      %s30 = sadd.s32 1, %s21
      %s31 = scalar_select %p28, %s30, %s21
      %p32 = scmp.ge.s32.totalorder %s31, 2
      %s33 = scalar_select %p32, 0, %s31
      %s35 = sadd.s32 %s34, 1
      %p38 = scmp.eq.s32.totalorder %s14, 3
      %p39 = scmp.ne.s32.totalorder %s34, %s36
      %p40 = scmp.eq.s32.totalorder %s14, 0
      %p41 = por %p39, %p40
      %p42 = scmp.ne.s32.totalorder %s34, %s36
      %p43 = scmp.eq.s32.totalorder %s19, 3
      %p44 = por %p42, %p43
      %p45 = scmp.ne.s32.totalorder %s36, %s37
      %p46 = scmp.eq.s32.totalorder %s19, 0
      %p47 = por %p45, %p46
      %p48 = scmp.ne.s32.totalorder %s36, %s37
      %p49 = scmp.eq.s32.totalorder %s20, 3
      %p50 = por %p48, %p49
      %p52 = scmp.ne.s32.totalorder %s37, %s51
      %p53 = scmp.eq.s32.totalorder %s20, 0
      %p54 = por %p52, %p53
      %s55 = ssub.s32 %s21, %s33
      %s56 = ssub.s32 %s22, %s29
      %s57 = sor.u32 %s55, %s56
      %p58 = scmp.eq.s32.totalorder %s57, 0
      %s60 = sadd.s32 %s59, 1
      %s61 = scalar_select %p58, %s59, %s60
      %p64 = pneg %p58
      %p65 = scmp.eq.s32.totalorder %s14, 3
      %p66 = por %p64, %p65
      %p67 = scmp.ne.s32.totalorder %s59, %s62
      %p68 = scmp.eq.s32.totalorder %s14, 0
      %p69 = por %p67, %p68
      %p70 = scmp.ne.s32.totalorder %s59, %s62
      %p71 = scmp.eq.s32.totalorder %s19, 3
      %p72 = por %p70, %p71
      %p73 = scmp.ne.s32.totalorder %s62, %s63
      %p74 = scmp.eq.s32.totalorder %s19, 0
      %p75 = por %p73, %p74
      %p76 = scmp.ne.s32.totalorder %s62, %s63
      %p77 = scmp.eq.s32.totalorder %s20, 3
      %p78 = por %p76, %p77
      %p80 = scmp.ne.s32.totalorder %s63, %s79
      %p81 = scmp.eq.s32.totalorder %s20, 0
      %p82 = por %p80, %p81
      %s83 = ssub.s32 %s21, %s33
      %s84 = ssub.s32 %s22, %s29
      %s85 = sor.u32 %s83, %s84
      %p86 = scmp.eq.s32.totalorder %s85, 0
      %s88 = sadd.s32 %s87, 1
      %s89 = scalar_select %p86, %s87, %s88
      %p92 = pneg %p86
      %p93 = scmp.eq.s32.totalorder %s14, 3
      %p94 = por %p92, %p93
      %p95 = scmp.ne.s32.totalorder %s87, %s90
      %p96 = scmp.eq.s32.totalorder %s14, 0
      %p97 = por %p95, %p96
      %p98 = scmp.ne.s32.totalorder %s87, %s90
      %p99 = scmp.eq.s32.totalorder %s19, 3
      %p100 = por %p98, %p99
      %p101 = scmp.ne.s32.totalorder %s90, %s91
      %p102 = scmp.eq.s32.totalorder %s19, 0
      %p103 = por %p101, %p102
      %p104 = scmp.ne.s32.totalorder %s90, %s91
      %p105 = scmp.eq.s32.totalorder %s20, 3
      %p106 = por %p104, %p105
      %p108 = scmp.ne.s32.totalorder %s91, %s107
      %p109 = scmp.eq.s32.totalorder %s20, 0
      %p110 = por %p108, %p109
      %s111 = ssub.s32 %s21, %s33
      %s112 = ssub.s32 %s22, %s29
      %s113 = sor.u32 %s111, %s112
      %p114 = scmp.eq.s32.totalorder %s113, 0
      %s116 = sadd.s32 %s115, 1
      %s117 = scalar_select %p114, %s115, %s116
      %p120 = pneg %p114
      %p121 = scmp.eq.s32.totalorder %s14, 3
      %p122 = por %p120, %p121
      %p123 = scmp.ne.s32.totalorder %s115, %s118
      %p124 = scmp.eq.s32.totalorder %s14, 0
      %p125 = por %p123, %p124
      %p126 = scmp.ne.s32.totalorder %s115, %s118
      %p127 = scmp.eq.s32.totalorder %s19, 3
      %p128 = por %p126, %p127
      %p129 = scmp.ne.s32.totalorder %s118, %s119
      %p130 = scmp.eq.s32.totalorder %s19, 0
      %p131 = por %p129, %p130
      %p132 = scmp.ne.s32.totalorder %s118, %s119
      %p133 = scmp.eq.s32.totalorder %s20, 3
      %p134 = por %p132, %p133
      %p136 = scmp.ne.s32.totalorder %s119, %s135
      %p137 = scmp.eq.s32.totalorder %s20, 0
      %p138 = por %p136, %p137
      %p139 = scmp.le.s32.totalorder 1, %s14
      %p140 = scmp.lt.s32.totalorder %s14, 5
      %p141 = pnand %p139, %p140
      %p142 = pneg %p141
      // Predicated region
      $region9: #{tpu_custom_call.1} parent=5 // pred_check
        _
      $region10: #{tpu_custom_call.1} parent=5 // pred_check_branch
        %144 = sbr.rel (%p141) target = $region12
      $region11: #{tpu_custom_call.1} parent=5 // pred_region
        %s145 = ssub.s32 %s14, 1
        // Predicated region
        $region13: #{tpu_custom_call.1} parent=11 // pred_check
          %p146 = pneg %p47
        $region14: #{tpu_custom_call.1} parent=11 // pred_check_branch
          %148 = sbr.rel (%p146) target = $region16
        $region15: #{tpu_custom_call.1} parent=11 // pred_region
          %s150 = ssub.s32 256, 256
          %151 = vsyncadd [#allocation3], %s150
          %s152 = sshll.u32 [#allocation2], 4
          %s153 = int_to_ptr.vmem [resolvable:$true] %s152
          %158 = dma.hbm_to_vmem [thread:$0]  %s0, 256, %s153, [#allocation3], 128, 128, 8
        $region16: #{tpu_custom_call.1} parent=11 // pred_fallthru
          _
      $region12: #{tpu_custom_call.1} parent=5 // pred_fallthru
        _
      %p159 = scmp.lt.s32.totalorder %s14, 4
      // Predicated region
      $region17: #{tpu_custom_call.1} parent=5 // pred_check
        %p160 = pneg %p159
      $region18: #{tpu_custom_call.1} parent=5 // pred_check_branch
        %162 = sbr.rel (%p160) target = $region20
      $region19: #{tpu_custom_call.1} parent=5 // pred_region
        // Predicated region
        $region21: #{tpu_custom_call.1} parent=19 // pred_check
          %p163 = pneg %p69
        $region22: #{tpu_custom_call.1} parent=19 // pred_check_branch
          %165 = sbr.rel (%p163) target = $region24
        $region23: #{tpu_custom_call.1} parent=19 // pred_region
          %s166 = sand.u32 %s59, 1
          %s167 = scalar_lea.sflag [#allocation5], %s166
          %s168 = sand.u32 %s59, 1
          %s169 = smul.addr %s168, 128
          %s170 = scalar_lea.vmem [#allocation4], %s169
          %s172 = ssub.s32 2048, 2048
          %173 = vsyncadd %s167, %s172
          %s174 = smul.addr %s21, 32
          %s175 = sadd.s32 %s22, %s174
          %s176 = smul.addr %s175, 128
          %s177 = scalar_lea.hbm %s1, %s176
          %s178 = sshll.u32 %s170, 4
          %s179 = int_to_ptr.vmem [resolvable:$true] %s178
          %184 = dma.hbm_to_vmem [thread:$0]  %s177, 2048, %s179, %s167, 256, 128, 8
        $region24: #{tpu_custom_call.1} parent=19 // pred_fallthru
          _
      $region20: #{tpu_custom_call.1} parent=5 // pred_fallthru
        _
      %p185 = scmp.le.s32.totalorder 1, %s14
      %p186 = scmp.lt.s32.totalorder %s14, 5
      %p187 = pnand %p185, %p186
      %p188 = pneg %p187
      // Predicated region
      $region25: #{tpu_custom_call.1} parent=5 // pred_check
        _
      $region26: #{tpu_custom_call.1} parent=5 // pred_check_branch
        %190 = sbr.rel (%p187) target = $region28
      $region27: #{tpu_custom_call.1} parent=5 // pred_region
        %s191 = ssub.s32 %s14, 1
        // Predicated region
        $region29: #{tpu_custom_call.1} parent=27 // pred_check
          %p192 = pneg %p47
        $region30: #{tpu_custom_call.1} parent=27 // pred_check_branch
          %194 = sbr.rel (%p192) target = $region32
        $region31: #{tpu_custom_call.1} parent=27 // pred_region
          %195 = dma.done [#allocation3], 256
        $region32: #{tpu_custom_call.1} parent=27 // pred_fallthru
          _
        %s196 = sand.u32 %s62, 1
        %s197 = scalar_lea.sflag [#allocation5], %s196
        %s198 = sand.u32 %s62, 1
        %s199 = smul.addr %s198, 128
        %s200 = scalar_lea.vmem [#allocation4], %s199
        // Predicated region
        $region33: #{tpu_custom_call.1} parent=27 // pred_check
          %p201 = pneg %p75
        $region34: #{tpu_custom_call.1} parent=27 // pred_check_branch
          %203 = sbr.rel (%p201) target = $region36
        $region35: #{tpu_custom_call.1} parent=27 // pred_region
          %204 = dma.done %s197, 2048
        $region36: #{tpu_custom_call.1} parent=27 // pred_fallthru
          _
        %p205 = pneg %p47
        %p206 = pneg %p44
        %s207 = sand.u32 %s62, 1
        %s208 = scalar_lea.sflag [#allocation5], %s207
        %s209 = sand.u32 %s62, 1
        %s210 = smul.addr %s209, 128
        %s211 = scalar_lea.vmem [#allocation4], %s210
        %p212 = pneg %p75
        %p213 = pneg %p72
        %p214 = pneg %p103
        %p215 = pneg %p100
        %p216 = scmp.lt.s32.totalorder %s23, 1
        %s217 = scalar_select %p216, %s23, 1
        %p218 = scmp.lt.s32.totalorder %s24, 1
        %s219 = scalar_select %p218, %s24, 1
        %s220 = smul.addr %s219, 2
        %s221 = smul.addr %s217, 4
        %s222 = sadd.s32 %s220, %s221
        %s223 = smul.addr %s222, 8
        %s224 = scalar_lea.vmem %s2, %s223
        %p225 = pneg %p131
        %p226 = pneg %p128
        %p227 = scmp.lt.s32.totalorder %s23, 1
        %s228 = scalar_select %p227, %s23, 1
        %p229 = scmp.lt.s32.totalorder %s24, 1
        %s230 = scalar_select %p229, %s24, 1
        %s231 = smul.addr %s230, 2
        %s232 = smul.addr %s228, 4
        %s233 = sadd.s32 %s231, %s232
        %s234 = smul.addr %s233, 8
        %s235 = scalar_lea.vmem %s3, %s234
        %p236 = scmp.lt.s32.totalorder %s23, 1
        %s237 = scalar_select %p236, %s23, 1
        %p238 = scmp.lt.s32.totalorder %s24, 1
        %s239 = scalar_select %p238, %s24, 1
        %s240 = smul.addr %s239, 2
        %s241 = smul.addr %s237, 4
        %s242 = sadd.s32 %s240, %s241
        %s243 = smul.addr %s242, 8
        %s244 = scalar_lea.vmem %s2, %s243
        %p245 = scmp.lt.s32.totalorder %s23, 1
        %s246 = scalar_select %p245, %s23, 1
        %p247 = scmp.lt.s32.totalorder %s24, 1
        %s248 = scalar_select %p247, %s24, 1
        %s249 = smul.addr %s248, 2
        %s250 = smul.addr %s246, 4
        %s251 = sadd.s32 %s249, %s250
        %s252 = smul.addr %s251, 8
        %s253 = scalar_lea.vmem %s3, %s252
        %v254 = vld [vmem:[#allocation2] sm:$0xff]
        %v255 = vld [vmem:[#allocation2 + $0x8] sm:$0xff]
        %v256 = vld [vmem:[%s200] sm:$0xff]
        %v257 = vld [vmem:[%s200 + $0x8] sm:$0xff]
        %v258 = vld [vmem:[%s200 + $0x10] sm:$0xff]
        %v259 = vld [vmem:[%s200 + $0x18] sm:$0xff]
        %v260 = vld [vmem:[%s200 + $0x20] sm:$0xff]
        %v261 = vld [vmem:[%s200 + $0x28] sm:$0xff]
        %v262 = vld [vmem:[%s200 + $0x30] sm:$0xff]
        %v263 = vld [vmem:[%s200 + $0x38] sm:$0xff]
        %v264 = vld [vmem:[%s200 + $0x40] sm:$0xff]
        %v265 = vld [vmem:[%s200 + $0x48] sm:$0xff]
        %v266 = vld [vmem:[%s200 + $0x50] sm:$0xff]
        %v267 = vld [vmem:[%s200 + $0x58] sm:$0xff]
        %v268 = vld [vmem:[%s200 + $0x60] sm:$0xff]
        %v269 = vld [vmem:[%s200 + $0x68] sm:$0xff]
        %v270 = vld [vmem:[%s200 + $0x70] sm:$0xff]
        %v271 = vld [vmem:[%s200 + $0x78] sm:$0xff]
        %272 = vmatprep.subr.mxu0 0.0
        %273 = vmatpush1.msra.mxu0 %v256
        %274 = vmatprep.subr.mxu0 0.0
        %275 = vmatpush1.msra.mxu0 %v257
        %276 = vmatprep.subr.mxu0 0.0
        %277 = vmatpush1.msra.mxu0 %v258
        %278 = vmatprep.subr.mxu0 0.0
        %279 = vmatpush1.msra.mxu0 %v259
        %280 = vmatprep.subr.mxu0 0.0
        %281 = vmatpush1.msra.mxu0 %v260
        %282 = vmatprep.subr.mxu0 0.0
        %283 = vmatpush1.msra.mxu0 %v261
        %284 = vmatprep.subr.mxu0 0.0
        %285 = vmatpush1.msra.mxu0 %v262
        %286 = vmatprep.subr.mxu0 0.0
        %287 = vmatpush1.msra.mxu0 %v263
        %288 = vmatprep.subr.mxu0 0.0
        %289 = vmatpush1.msra.mxu0 %v264
        %290 = vmatprep.subr.mxu0 0.0
        %291 = vmatpush1.msra.mxu0 %v265
        %292 = vmatprep.subr.mxu0 0.0
        %293 = vmatpush1.msra.mxu0 %v266
        %294 = vmatprep.subr.mxu0 0.0
        %295 = vmatpush1.msra.mxu0 %v267
        %296 = vmatprep.subr.mxu0 0.0
        %297 = vmatpush1.msra.mxu0 %v268
        %298 = vmatprep.subr.mxu0 0.0
        %299 = vmatpush1.msra.mxu0 %v269
        %300 = vmatprep.subr.mxu0 0.0
        %301 = vmatpush1.msra.mxu0 %v270
        %302 = vmatprep.subr.mxu0 0.0
        %303 = vmatpush1.msra.mxu0 %v271
        %304 = vmatprep.subr.mxu0 0.0
        %305 = vmatpush1.msra.mxu0 0.0
        %306 = vmatprep.subr.mxu0 0.0
        %307 = vmatpush1.msra.mxu0 0.0
        %308 = vmatprep.subr.mxu0 0.0
        %309 = vmatpush1.msra.mxu0 0.0
        %310 = vmatprep.subr.mxu0 0.0
        %311 = vmatpush1.msra.mxu0 0.0
        %312 = vmatprep.subr.mxu0 0.0
        %313 = vmatpush1.msra.mxu0 0.0
        %314 = vmatprep.subr.mxu0 0.0
        %315 = vmatpush1.msra.mxu0 0.0
        %316 = vmatprep.subr.mxu0 0.0
        %317 = vmatpush1.msra.mxu0 0.0
        %318 = vmatprep.subr.mxu0 0.0
        %319 = vmatpush1.msra.mxu0 0.0
        %320 = vmatprep.subr.mxu0 0.0
        %321 = vmatpush1.msra.mxu0 0.0
        %322 = vmatprep.subr.mxu0 0.0
        %323 = vmatpush1.msra.mxu0 0.0
        %324 = vmatprep.subr.mxu0 0.0
        %325 = vmatpush1.msra.mxu0 0.0
        %326 = vmatprep.subr.mxu0 0.0
        %327 = vmatpush1.msra.mxu0 0.0
        %328 = vmatprep.subr.mxu0 0.0
        %329 = vmatpush1.msra.mxu0 0.0
        %330 = vmatprep.subr.mxu0 0.0
        %331 = vmatpush1.msra.mxu0 0.0
        %332 = vmatprep.subr.mxu0 0.0
        %333 = vmatpush1.msra.mxu0 0.0
        %334 = vmatprep.subr.mxu0 0.0
        %335 = vmatpush1.msra.mxu0 0.0
        %336 = vmatprep.mubr.f32.mxu0 0.0
        %337 = vmatmul.mubr.f32.gmra.mrb[0].mxu0 %v254
        %v338 = vpop.f32.mrb[0].mxu0
        %v339 = vadd.f32 0.0, %v338
        %v340 = vpop.f32.mrb[0].mxu0
        %341 = vmatprep.mubr.f32.mxu0 0.0
        %342 = vmatmul.mubr.f32.gmra.mrb[0].mxu0 %v255
        %v343 = vpop.f32.mrb[0].mxu0
        %v344 = vadd.f32 0.0, %v343
        %v345 = vpop.f32.mrb[0].mxu0
        %346 = vdwg.mxu0
        %347 = vadd.xlane.f32.xlu0 %v339
        %v348 = vpop.xlane.xlu0 %347
        %349 = vadd.xlane.f32.xlu0 %v344
        %v350 = vpop.xlane.xlu0 %349
        %vm351 = vcmask 7168
        %352 = vst.msk [vmem:[%s244] sm:$0xff] %vm351, %v348
        %353 = vst.msk [vmem:[%s244 + $0x8] sm:$0xff] %vm351, %v350
        %v354 = vmul.f32 %v339, %v339
        %v355 = vmul.f32 %v344, %v344
        %356 = vadd.xlane.f32.xlu0 %v354
        %v357 = vpop.xlane.xlu0 %356
        %358 = vadd.xlane.f32.xlu0 %v355
        %v359 = vpop.xlane.xlu0 %358
        %360 = vst.msk [vmem:[%s253] sm:$0xff] %vm351, %v357
        %361 = vst.msk [vmem:[%s253 + $0x8] sm:$0xff] %vm351, %v359
        %p362 = scmp.lt.s32.totalorder %s23, 1
        %s363 = scalar_select %p362, %s23, 1
        %p364 = scmp.lt.s32.totalorder %s24, 1
        %s365 = scalar_select %p364, %s24, 1
        %s366 = smul.addr %s365, 2
        %s367 = smul.addr %s363, 4
        %s368 = sadd.s32 %s366, %s367
        %s369 = smul.addr %s368, 8
        %s370 = scalar_lea.vmem %s2, %s369
        %p371 = scmp.lt.s32.totalorder %s23, 1
        %s372 = scalar_select %p371, %s23, 1
        %p373 = scmp.lt.s32.totalorder %s24, 1
        %s374 = scalar_select %p373, %s24, 1
        %s375 = smul.addr %s374, 2
        %s376 = smul.addr %s372, 4
        %s377 = sadd.s32 %s375, %s376
        %s378 = smul.addr %s377, 8
        %s379 = scalar_lea.vmem %s3, %s378
        // Predicated region
        $region37: #{tpu_custom_call.1} parent=27 // pred_check
          %p380 = pneg %p100
        $region38: #{tpu_custom_call.1} parent=27 // pred_check_branch
          %382 = sbr.rel (%p380) target = $region40
        $region39: #{tpu_custom_call.1} parent=27 // pred_region
          _
        $region40: #{tpu_custom_call.1} parent=27 // pred_fallthru
          _
        // Predicated region
        $region41: #{tpu_custom_call.1} parent=27 // pred_check
          %p383 = pneg %p128
        $region42: #{tpu_custom_call.1} parent=27 // pred_check_branch
          %385 = sbr.rel (%p383) target = $region44
        $region43: #{tpu_custom_call.1} parent=27 // pred_region
          _
        $region44: #{tpu_custom_call.1} parent=27 // pred_fallthru
          _
      $region28: #{tpu_custom_call.1} parent=5 // pred_fallthru
        _
      %p386 = scmp.le.s32.totalorder 2, %s14
      // Predicated region
      $region45: #{tpu_custom_call.1} parent=5 // pred_check
        %p387 = pneg %p386
      $region46: #{tpu_custom_call.1} parent=5 // pred_check_branch
        %389 = sbr.rel (%p387) target = $region48
      $region47: #{tpu_custom_call.1} parent=5 // pred_region
        %s390 = ssub.s32 %s14, 2
        // Predicated region
        $region49: #{tpu_custom_call.1} parent=47 // pred_check
          %p391 = pneg %p106
        $region50: #{tpu_custom_call.1} parent=47 // pred_check_branch
          %393 = sbr.rel (%p391) target = $region52
        $region51: #{tpu_custom_call.1} parent=47 // pred_region
          %p394 = scmp.lt.s32.totalorder %s25, 1
          %s395 = scalar_select %p394, %s25, 1
          %p396 = scmp.lt.s32.totalorder %s26, 1
          %s397 = scalar_select %p396, %s26, 1
          %s398 = smul.addr %s397, 2
          %s399 = smul.addr %s395, 4
          %s400 = sadd.s32 %s398, %s399
          %s401 = smul.addr %s400, 8
          %s402 = scalar_lea.vmem %s2, %s401
        $region52: #{tpu_custom_call.1} parent=47 // pred_fallthru
          _
        // Predicated region
        $region53: #{tpu_custom_call.1} parent=47 // pred_check
          %p403 = pneg %p134
        $region54: #{tpu_custom_call.1} parent=47 // pred_check_branch
          %405 = sbr.rel (%p403) target = $region56
        $region55: #{tpu_custom_call.1} parent=47 // pred_region
          %p406 = scmp.lt.s32.totalorder %s25, 1
          %s407 = scalar_select %p406, %s25, 1
          %p408 = scmp.lt.s32.totalorder %s26, 1
          %s409 = scalar_select %p408, %s26, 1
          %s410 = smul.addr %s409, 2
          %s411 = smul.addr %s407, 4
          %s412 = sadd.s32 %s410, %s411
          %s413 = smul.addr %s412, 8
          %s414 = scalar_lea.vmem %s3, %s413
        $region56: #{tpu_custom_call.1} parent=47 // pred_fallthru
          _
      $region48: #{tpu_custom_call.1} parent=5 // pred_fallthru
        _
    $region6: #{tpu_custom_call.1} parent=1 // loop_footer
      %s18 = sadd.s32 1, %s14
    $region7: #{tpu_custom_call.1} parent=1 // loop_footer_branch
      %13 = sbr.rel target = $region3
    $region8: #{tpu_custom_call.1} parent=1 // loop_exit
      _
    %415 = vsyncpa [#allocation3], 1
    %s416 = scalar_lea.sflag [#allocation3], 1
    %417 = vsyncpa %s416, 1
    %418 = vsyncpa [#allocation5], 1
    %s419 = scalar_lea.sflag [#allocation5], 1
    %420 = vsyncpa %s419, 1

</llo_original>
